<compile_context>
chip_gen: v7x
topology: tpu7x:2x2x1
jax: 0.10.0
libtpu: 0.0.40
codegen_flags: <defaults>
</compile_context>

<pallas_src>
import functools

import jax
import jax.numpy as jnp
from jax.experimental import pallas as pl
from jax.experimental.pallas import tpu as pltpu

_LANE = 128
_MiB = 1024 * 1024


def _round_up(x, m):
    return (x + m - 1) // m * m


def _cdiv(a, b):
    return (a + b - 1) // b


@functools.lru_cache(maxsize=None)
def _vmem_params():
    """Generation-aware VMEM policy.

    Returns (tile_budget, vmem_limit):
      tile_budget - byte budget for ONE logits tile (in its native dtype).
      vmem_limit  - value for CompilerParams(vmem_limit_bytes=...).
    Sized so that 2x double-buffered logits tiles + an up-to-2x f32 temporary
    of the tile (bf16 inputs) + small side/scratch buffers fit comfortably on
    v5e/v6e (128 MiB physical VMEM) and v7x (64 MiB physical VMEM).
    """
    try:
        cap = int(pltpu.get_tpu_info().vmem_capacity_bytes)
        if cap <= 0:
            raise ValueError(cap)
    except Exception:
        cap = 64 * _MiB            # conservative fallback: v7x-sized per-core VMEM
    limit = max(32 * _MiB, min(96 * _MiB, (cap * 3) // 4))
    tile_budget = max(2 * _MiB, min(16 * _MiB, (limit - 12 * _MiB) // 4))
    return tile_budget, limit


def _class_pad_value(dtype):
    # Huge negative logit for class padding: exp underflows to exactly 0.
    # Dtype aware so fp16/bf16 inputs get a representable constant.
    if jnp.issubdtype(dtype, jnp.floating):
        return float(jnp.finfo(dtype).min)
    return -(2 ** 30)


# ----------------------------------------------------------------------------
# Kernel 1: class-last (N, C) layout.  Grid = (P cores, row tiles per core).
# ----------------------------------------------------------------------------
def _ce_rows_kernel(logits_ref, side_ref, num_ref, den_ref, num_sc, den_sc, *,
                    n_chunks, chunk):
    """side_ref rows hold [w[y_i], x_i[y_i]] (pre-gathered in XLA), so each row
    only needs a max pass and an exp-sum pass over the lane-dense class axis.
    Partial sums accumulate into (chunk, 1) VMEM vectors; the scalar reduce
    happens once, in the per-core epilogue."""
    i = pl.program_id(1)

    @pl.when(i == 0)
    def _():
        num_sc[...] = jnp.zeros_like(num_sc)
        den_sc[...] = jnp.zeros_like(den_sc)

    # Statically unrolled row-chunk loop: the HBM tile can be several MiB
    # (amortizes per-grid-step overhead) while per-chunk temporaries stay small.
    for j in range(n_chunks):
        r0 = j * chunk
        x = logits_ref[pl.ds(r0, chunk), :]            # (chunk, Cp) native dtype
        sd = side_ref[pl.ds(r0, chunk), :]             # (chunk, 2)  f32
        w = sd[:, 0:1]                                 # w[y_i]
        x_t = sd[:, 1:2]                               # x_i[y_i]
        # max is exact in the native dtype; only the exp pass widens to f32
        # (per-expression cast, no persistent full-tile f32 copy).
        m = jnp.max(x, axis=-1, keepdims=True).astype(jnp.float32)
        s = jnp.sum(jnp.exp(x.astype(jnp.float32) - m), axis=-1, keepdims=True)
        lse = jnp.log(s) + m
        num_sc[...] += w * (lse - x_t)
        den_sc[...] += w

    @pl.when(i == pl.num_programs(1) - 1)
    def _():
        num_ref[...] = jnp.sum(num_sc[...], keepdims=True).reshape(1, 1, 1)
        den_ref[...] = jnp.sum(den_sc[...], keepdims=True).reshape(1, 1, 1)


@jax.jit
def _cross_entropy_rows(logits, targets, weight):
    """logits (N, C) class-last; targets (N,) int; weight (C,) float."""
    n, c = logits.shape
    itemsize = logits.dtype.itemsize
    tile_budget, vmem_limit = _vmem_params()

    # --- XLA-side pre-gather (N elements, negligible): one (N, 2) side stream.
    tgt = targets.astype(jnp.int32)
    w_rows = weight.astype(jnp.float32)[tgt]                                   # (N,)
    x_t = jnp.take_along_axis(logits, tgt[:, None], axis=-1).astype(jnp.float32)
    side = jnp.concatenate([w_rows[:, None], x_t], axis=1)                     # (N, 2)

    # --- Lane-dense class axis (padded classes can never be selected).
    c_pad = _round_up(c, _LANE)
    if c_pad != c:
        logits = jnp.pad(logits, ((0, 0), (0, c_pad - c)),
                         constant_values=_class_pad_value(logits.dtype))

    # --- Byte-targeted tile sizing.
    sub = {4: 8, 2: 16, 1: 32}.get(itemsize, 8)
    bytes_per_row = c_pad * itemsize
    n_sub = _round_up(n, sub)
    # Rows per inner chunk: <= ~2 MiB of logits and <= 1024 rows (keeps the
    # (chunk, 1) temporaries / accumulators small).
    chunk = min(1024, max(sub, ((2 * _MiB) // bytes_per_row) // sub * sub), n_sub)
    # Chunks per grid step: fill ~tile_budget, at most 8 unrolled chunks.
    n_chunks = max(1, min(8, tile_budget // max(1, chunk * bytes_per_row),
                          _cdiv(n_sub, chunk)))
    tm = chunk * n_chunks

    # --- Grid: (P, tiles_per_core).  P=2 shards the row reduction across the
    # two TensorCores of a v7x megacore chip; harmless on 1-TC v5e/v6e.
    n_tiles = _cdiv(n, tm)
    p_cores = 2 if n_tiles >= 2 else 1
    n_tiles = _round_up(n_tiles, p_cores)
    # Rebalance the tile so row padding stays negligible.
    rows_per_tile = min(tm, _round_up(_cdiv(n, n_tiles), sub))
    n_chunks = max(1, _cdiv(rows_per_tile, chunk))
    chunk = max(sub, _round_up(_cdiv(rows_per_tile, n_chunks), sub))
    tm = chunk * n_chunks
    n_pad = n_tiles * tm
    tiles_per_core = n_tiles // p_cores

    if n_pad != n:
        pad = n_pad - n
        logits = jnp.pad(logits, ((0, pad), (0, 0)))   # zero rows -> finite lse
        side = jnp.pad(side, ((0, pad), (0, 0)))       # zero weight -> 0 contribution

    kernel = functools.partial(_ce_rows_kernel, n_chunks=n_chunks, chunk=chunk)
    num, den = pl.pallas_call(
        kernel,
        out_shape=(jax.ShapeDtypeStruct((p_cores, 1, 1), jnp.float32),
                   jax.ShapeDtypeStruct((p_cores, 1, 1), jnp.float32)),
        grid_spec=pltpu.PrefetchScalarGridSpec(
            num_scalar_prefetch=0,
            grid=(p_cores, tiles_per_core),
            in_specs=[
                pl.BlockSpec((tm, c_pad), lambda p, i: (p * tiles_per_core + i, 0)),
                pl.BlockSpec((tm, 2), lambda p, i: (p * tiles_per_core + i, 0)),
            ],
            out_specs=[
                pl.BlockSpec((1, 1, 1), lambda p, i: (p, 0, 0)),
                pl.BlockSpec((1, 1, 1), lambda p, i: (p, 0, 0)),
            ],
            scratch_shapes=[
                pltpu.VMEM((chunk, 1), jnp.float32),   # per-core numerator partials
                pltpu.VMEM((chunk, 1), jnp.float32),   # per-core denominator partials
            ],
        ),
        compiler_params=pltpu.CompilerParams(
            dimension_semantics=("parallel", "arbitrary"),
            vmem_limit_bytes=vmem_limit,
        ),
    )(logits, side)
    return jnp.sum(num) / jnp.sum(den)


# ----------------------------------------------------------------------------
# Kernel 2: fused DETR path.  Logits (B, C, Q) read in their native layout:
# class axis on sublanes, query axis on (128-padded) lanes.  Tiny problems run
# as a single grid step (whole slab in one block).
# ----------------------------------------------------------------------------
def _ce_cq_kernel(logits_ref, side_ref, num_ref, den_ref, num_sc, den_sc):
    bi = pl.program_id(0)
    qi = pl.program_id(1)

    @pl.when(jnp.logical_and(bi == 0, qi == 0))
    def _():
        num_sc[...] = jnp.zeros_like(num_sc)
        den_sc[...] = jnp.zeros_like(den_sc)

    x = logits_ref[...]                    # (bb, C, tq) native dtype
    w = side_ref[:, 0:1, :]                # (bb, 1, tq) f32  -- w[y]
    x_t = side_ref[:, 1:2, :]              # (bb, 1, tq) f32  -- x[y]

    m = jnp.max(x, axis=1, keepdims=True).astype(jnp.float32)
    s = jnp.sum(jnp.exp(x.astype(jnp.float32) - m), axis=1, keepdims=True)
    lse = jnp.log(s) + m

    num_sc[...] += w * (lse - x_t)
    den_sc[...] += w

    @pl.when(jnp.logical_and(bi == pl.num_programs(0) - 1,
                             qi == pl.num_programs(1) - 1))
    def _():
        num_ref[...] = jnp.sum(jnp.sum(num_sc[...], axis=0), axis=-1, keepdims=True)
        den_ref[...] = jnp.sum(jnp.sum(den_sc[...], axis=0), axis=-1, keepdims=True)


@jax.jit
def _cross_entropy_bcq(logits, targets, weight):
    """Fused DETR path: logits (B, C, Q), targets (B, Q), weight (C,)."""
    b, c, q = logits.shape
    itemsize = logits.dtype.itemsize
    tile_budget, vmem_limit = _vmem_params()
    slab_cap = min(tile_budget, 8 * _MiB)

    # --- XLA-side pre-gather: w[y] and x[y] merged into one (B, 2, Q) stream.
    tgt = targets.astype(jnp.int32)
    w = weight.astype(jnp.float32)[tgt]                               # (B, Q)
    x_t = jnp.take_along_axis(logits, tgt[:, None, :], axis=1)        # (B, 1, Q)
    x_t = x_t[:, 0, :].astype(jnp.float32)                            # (B, Q)

    # --- Always lane-dense query axis (padded queries get weight 0).
    qp = _round_up(q, _LANE)

    if b * c * qp * itemsize <= slab_cap:
        bb, tq = b, qp                     # single grid step: whole (B, C, Qp) slab
    else:
        bb = 1
        bytes_per_col = c * itemsize
        tq_cap = max(_LANE, (slab_cap // bytes_per_col) // _LANE * _LANE)
        tq = min(qp, tq_cap, 8192)         # 8192-lane cap keeps temporaries small
        qp = _round_up(qp, tq)

    if qp != q:
        pad_q = qp - q
        logits = jnp.pad(logits, ((0, 0), (0, 0), (0, pad_q)))
        w = jnp.pad(w, ((0, 0), (0, pad_q)))
        x_t = jnp.pad(x_t, ((0, 0), (0, pad_q)))

    side = jnp.stack([w, x_t], axis=1)     # (B, 2, Qp) f32

    num, den = pl.pallas_call(
        _ce_cq_kernel,
        out_shape=(jax.ShapeDtypeStruct((1, 1), jnp.float32),
                   jax.ShapeDtypeStruct((1, 1), jnp.float32)),
        grid_spec=pltpu.PrefetchScalarGridSpec(
            num_scalar_prefetch=0,
            grid=(b // bb, qp // tq),
            in_specs=[
                pl.BlockSpec((bb, c, tq), lambda bi, qi: (bi, 0, qi)),  # logits slab
                pl.BlockSpec((bb, 2, tq), lambda bi, qi: (bi, 0, qi)),  # [w, x_t]
            ],
            out_specs=[
                pl.BlockSpec((1, 1), lambda bi, qi: (0, 0)),
                pl.BlockSpec((1, 1), lambda bi, qi: (0, 0)),
            ],
            scratch_shapes=[
                pltpu.VMEM((bb, 1, tq), jnp.float32),   # numerator partials
                pltpu.VMEM((bb, 1, tq), jnp.float32),   # denominator partials
            ],
        ),
        compiler_params=pltpu.CompilerParams(
            dimension_semantics=("arbitrary", "arbitrary"),
            vmem_limit_bytes=vmem_limit,
        ),
    )(logits, side)
    return num[0, 0] / den[0, 0]


# ----------------------------------------------------------------------------
# Module wrapper (mirrors the PyTorch CrossEntropy module).
# ----------------------------------------------------------------------------
class CrossEntropy:
    """JAX/Pallas port of the PyTorch CrossEntropy module."""

    def __init__(self, weight):
        self.weight = jnp.asarray(weight, dtype=jnp.float32)

    def __call__(self, inputs, targets, num_boxes=None):
        # num_boxes is unused by the reference module as well.
        if inputs.ndim == 3:
            # DETR convention: (B, C, Q) logits, (B, Q) targets.
            return _cross_entropy_bcq(inputs, targets, self.weight)
        return _cross_entropy_rows(inputs, targets, self.weight)


def _reference_ce(logits, targets, weight):
    """Pure-JAX reference (mirrors torch.nn.CrossEntropyLoss(weight=w))."""
    logits = logits.astype(jnp.float32)
    lse = jax.nn.logsumexp(logits, axis=-1)
    x_t = jnp.take_along_axis(logits, targets[:, None], axis=-1)[:, 0]
    w_t = weight[targets]
    return jnp.sum(w_t * (lse - x_t)) / jnp.sum(w_t)


if __name__ == "__main__":
    key = jax.random.PRNGKey(0)
    k1, k2, k3, k4, k5, k6 = jax.random.split(key, 6)

    # --- DETR-style 3D inputs: (B, C, Q) logits, (B, Q) targets (small shapes).
    B, C, Q = 2, 4, 8
    inputs = jax.random.normal(k1, (B, C, Q), dtype=jnp.float32)
    targets = jax.random.randint(k2, (B, Q), 0, C, dtype=jnp.int32)
    weight = jnp.array([1.0, 1.0, 1.0, 0.1], dtype=jnp.float32)  # eos_coef-style

    module = CrossEntropy(weight)
    loss3d = jax.block_until_ready(module(inputs, targets, num_boxes=4))

    logits_flat = jnp.transpose(inputs, (0, 2, 1)).reshape(B * Q, C)
    tgts_flat = targets.reshape(B * Q)
    ref3d = _reference_ce(logits_flat, tgts_flat, weight)
    assert jnp.allclose(loss3d, ref3d, atol=1e-5, rtol=1e-5), (loss3d, ref3d)

    # --- Generic 2D path: odd N (forces row padding), odd C (class padding).
    N2, C2 = 50, 37
    logits2 = jax.random.normal(k3, (N2, C2), dtype=jnp.float32)
    targets2 = jax.random.randint(k4, (N2,), 0, C2, dtype=jnp.int32)
    weight2 = jnp.linspace(0.5, 1.5, C2, dtype=jnp.float32)
    loss2d = jax.block_until_ready(CrossEntropy(weight2)(logits2, targets2, num_boxes=1))
    ref2d = _reference_ce(logits2, targets2, weight2)
    assert jnp.allclose(loss2d, ref2d, atol=1e-5, rtol=1e-5), (loss2d, ref2d)

    # --- Larger 2D case (~3 MB): exercises the multi-tile grid, the unrolled
    # row-chunk loop and the 2-way megacore split with per-core partials.
    N3, C3 = 20000, 37
    logits3 = jax.random.normal(k5, (N3, C3), dtype=jnp.float32)
    targets3 = jax.random.randint(k6, (N3,), 0, C3, dtype=jnp.int32)
    loss2d_big = jax.block_until_ready(
        CrossEntropy(weight2)(logits3, targets3, num_boxes=1))
    ref2d_big = _reference_ce(logits3, targets3, weight2)
    assert jnp.allclose(loss2d_big, ref2d_big, atol=1e-4, rtol=1e-4), (loss2d_big, ref2d_big)

    print("KERNEL_OK")
</pallas_src>

<mosaic_0001>
module attributes {stable_mosaic.version = 11 : i64} {
  func.func @_ce_cq_kernel(%arg0: i32, %arg1: i32, %arg2: memref<2x4x128xf32, #tpu.memory_space<vmem>>, %arg3: memref<2x2x128xf32, #tpu.memory_space<vmem>>, %arg4: memref<1x1xf32, #tpu.memory_space<vmem>>, %arg5: memref<1x1xf32, #tpu.memory_space<vmem>>, %arg6: memref<2x1x128xf32, #tpu.memory_space<vmem>>, %arg7: memref<2x1x128xf32, #tpu.memory_space<vmem>>) attributes {dimension_semantics = [#tpu.dimension_semantics<arbitrary>, #tpu.dimension_semantics<arbitrary>], iteration_bounds = array<i64: 1, 1>, scalar_prefetch = 0 : i64, scratch_operands = 2 : i64, tpu.core_type = #tpu.core_type<tc>, window_params = [{transform_indices = @transform_0, window_bounds = array<i64: 2, 4, 128>}, {transform_indices = @transform_1, window_bounds = array<i64: 2, 2, 128>}, {pipeline_mode = #tpu.pipeline_mode<synchronous>, transform_indices = @transform_2, window_bounds = array<i64: 1, 1>}, {pipeline_mode = #tpu.pipeline_mode<synchronous>, transform_indices = @transform_3, window_bounds = array<i64: 1, 1>}]} {
    %c0_i32 = arith.constant 0 : i32
    %0 = arith.cmpi eq, %arg0, %c0_i32 : i32
    %c0_i32_0 = arith.constant 0 : i32
    %1 = arith.cmpi eq, %arg1, %c0_i32_0 : i32
    %2 = arith.andi %0, %1 : i1
    %3 = arith.extui %2 : i1 to i32
    %c0_i32_1 = arith.constant 0 : i32
    %4 = arith.cmpi ne, %3, %c0_i32_1 : i32
    scf.if %4 {
      %cst_25 = arith.constant 0.000000e+00 : f32
      %30 = vector.broadcast %cst_25 : f32 to vector<2x1x128xf32>
      %c0_26 = arith.constant 0 : index
      %c0_27 = arith.constant 0 : index
      %c0_28 = arith.constant 0 : index
      %31 = vector.load %arg6[%c0_26, %c0_27, %c0_28] : memref<2x1x128xf32, #tpu.memory_space<vmem>>, vector<2x1x128xf32>
      tpu.vector_store %arg6[%c0_26, %c0_27, %c0_28], %30 {strides = array<i32>} : memref<2x1x128xf32, #tpu.memory_space<vmem>>, vector<2x1x128xf32>,
      %cst_29 = arith.constant 0.000000e+00 : f32
      %32 = vector.broadcast %cst_29 : f32 to vector<2x1x128xf32>
      %c0_30 = arith.constant 0 : index
      %c0_31 = arith.constant 0 : index
      %c0_32 = arith.constant 0 : index
      %33 = vector.load %arg7[%c0_30, %c0_31, %c0_32] : memref<2x1x128xf32, #tpu.memory_space<vmem>>, vector<2x1x128xf32>
      tpu.vector_store %arg7[%c0_30, %c0_31, %c0_32], %32 {strides = array<i32>} : memref<2x1x128xf32, #tpu.memory_space<vmem>>, vector<2x1x128xf32>,
    } else {
    }
    %c0 = arith.constant 0 : index
    %c0_2 = arith.constant 0 : index
    %c0_3 = arith.constant 0 : index
    %5 = vector.load %arg2[%c0, %c0_2, %c0_3] : memref<2x4x128xf32, #tpu.memory_space<vmem>>, vector<2x4x128xf32>
    %c0_4 = arith.constant 0 : index
    %c0_5 = arith.constant 0 : index
    %c0_6 = arith.constant 0 : index
    %6 = vector.load %arg3[%c0_4, %c0_5, %c0_6] : memref<2x2x128xf32, #tpu.memory_space<vmem>>, vector<2x1x128xf32>
    %c0_7 = arith.constant 0 : index
    %c1 = arith.constant 1 : index
    %c0_8 = arith.constant 0 : index
    %7 = vector.load %arg3[%c0_7, %c1, %c0_8] : memref<2x2x128xf32, #tpu.memory_space<vmem>>, vector<2x1x128xf32>
    %cst = arith.constant dense<0xFF800000> : vector<2x128xf32>
    %8 = vector.multi_reduction <maximumf>, %5, %cst [1] : vector<2x4x128xf32> to vector<2x128xf32>
    %9 = vector.shape_cast %8 : vector<2x128xf32> to vector<2x1x128xf32>
    %10 = vector.broadcast %9 : vector<2x1x128xf32> to vector<2x4x128xf32>
    %11 = arith.subf %5, %10 : vector<2x4x128xf32>
    %12 = math.exp %11 : vector<2x4x128xf32>
    %cst_9 = arith.constant dense<0.000000e+00> : vector<2x128xf32>
    %13 = vector.multi_reduction <add>, %12, %cst_9 [1] : vector<2x4x128xf32> to vector<2x128xf32>
    %14 = vector.shape_cast %13 : vector<2x128xf32> to vector<2x1x128xf32>
    %15 = math.log %14 : vector<2x1x128xf32>
    %16 = arith.addf %15, %9 : vector<2x1x128xf32>
    %c0_10 = arith.constant 0 : index
    %c0_11 = arith.constant 0 : index
    %c0_12 = arith.constant 0 : index
    %17 = vector.load %arg6[%c0_10, %c0_11, %c0_12] : memref<2x1x128xf32, #tpu.memory_space<vmem>>, vector<2x1x128xf32>
    %18 = arith.subf %16, %7 : vector<2x1x128xf32>
    %19 = arith.mulf %6, %18 : vector<2x1x128xf32>
    %20 = arith.addf %17, %19 : vector<2x1x128xf32>
    %c0_13 = arith.constant 0 : index
    %c0_14 = arith.constant 0 : index
    %c0_15 = arith.constant 0 : index
    %21 = vector.load %arg6[%c0_13, %c0_14, %c0_15] : memref<2x1x128xf32, #tpu.memory_space<vmem>>, vector<2x1x128xf32>
    tpu.vector_store %arg6[%c0_13, %c0_14, %c0_15], %20 {strides = array<i32>} : memref<2x1x128xf32, #tpu.memory_space<vmem>>, vector<2x1x128xf32>,
    %c0_16 = arith.constant 0 : index
    %c0_17 = arith.constant 0 : index
    %c0_18 = arith.constant 0 : index
    %22 = vector.load %arg7[%c0_16, %c0_17, %c0_18] : memref<2x1x128xf32, #tpu.memory_space<vmem>>, vector<2x1x128xf32>
    %23 = arith.addf %22, %6 : vector<2x1x128xf32>
    %c0_19 = arith.constant 0 : index
    %c0_20 = arith.constant 0 : index
    %c0_21 = arith.constant 0 : index
    %24 = vector.load %arg7[%c0_19, %c0_20, %c0_21] : memref<2x1x128xf32, #tpu.memory_space<vmem>>, vector<2x1x128xf32>
    tpu.vector_store %arg7[%c0_19, %c0_20, %c0_21], %23 {strides = array<i32>} : memref<2x1x128xf32, #tpu.memory_space<vmem>>, vector<2x1x128xf32>,
    %c0_i32_22 = arith.constant 0 : i32
    %25 = arith.cmpi eq, %arg0, %c0_i32_22 : i32
    %c0_i32_23 = arith.constant 0 : i32
    %26 = arith.cmpi eq, %arg1, %c0_i32_23 : i32
    %27 = arith.andi %25, %26 : i1
    %28 = arith.extui %27 : i1 to i32
    %c0_i32_24 = arith.constant 0 : i32
    %29 = arith.cmpi ne, %28, %c0_i32_24 : i32
    scf.if %29 {
      %c0_25 = arith.constant 0 : index
      %c0_26 = arith.constant 0 : index
      %c0_27 = arith.constant 0 : index
      %30 = vector.load %arg6[%c0_25, %c0_26, %c0_27] : memref<2x1x128xf32, #tpu.memory_space<vmem>>, vector<2x1x128xf32>
      %cst_28 = arith.constant dense<0.000000e+00> : vector<1x128xf32>
      %31 = vector.multi_reduction <add>, %30, %cst_28 [0] : vector<2x1x128xf32> to vector<1x128xf32>
      %cst_29 = arith.constant dense<0.000000e+00> : vector<1xf32>
      %32 = vector.multi_reduction <add>, %31, %cst_29 [1] : vector<1x128xf32> to vector<1xf32>
      %33 = vector.shape_cast %32 : vector<1xf32> to vector<1x1xf32>
      %c0_30 = arith.constant 0 : index
      %c0_31 = arith.constant 0 : index
      %34 = vector.load %arg4[%c0_30, %c0_31] : memref<1x1xf32, #tpu.memory_space<vmem>>, vector<1x1xf32>
      tpu.vector_store %arg4[%c0_30, %c0_31], %33 {strides = array<i32>} : memref<1x1xf32, #tpu.memory_space<vmem>>, vector<1x1xf32>,
      %c0_32 = arith.constant 0 : index
      %c0_33 = arith.constant 0 : index
      %c0_34 = arith.constant 0 : index
      %35 = vector.load %arg7[%c0_32, %c0_33, %c0_34] : memref<2x1x128xf32, #tpu.memory_space<vmem>>, vector<2x1x128xf32>
      %cst_35 = arith.constant dense<0.000000e+00> : vector<1x128xf32>
      %36 = vector.multi_reduction <add>, %35, %cst_35 [0] : vector<2x1x128xf32> to vector<1x128xf32>
      %cst_36 = arith.constant dense<0.000000e+00> : vector<1xf32>
      %37 = vector.multi_reduction <add>, %36, %cst_36 [1] : vector<1x128xf32> to vector<1xf32>
      %38 = vector.shape_cast %37 : vector<1xf32> to vector<1x1xf32>
      %c0_37 = arith.constant 0 : index
      %c0_38 = arith.constant 0 : index
      %39 = vector.load %arg5[%c0_37, %c0_38] : memref<1x1xf32, #tpu.memory_space<vmem>>, vector<1x1xf32>
      tpu.vector_store %arg5[%c0_37, %c0_38], %38 {strides = array<i32>} : memref<1x1xf32, #tpu.memory_space<vmem>>, vector<1x1xf32>,
    } else {
    }
    return
  }
  func.func @transform_0(%arg0: i32, %arg1: i32) -> (i32, i32, i32) {
    %c0_i32 = arith.constant 0 : i32
    %c0_i32_0 = arith.constant 0 : i32
    return %arg0, %c0_i32, %arg1 : i32, i32, i32
  }
  func.func @transform_1(%arg0: i32, %arg1: i32) -> (i32, i32, i32) {
    %c0_i32 = arith.constant 0 : i32
    %c0_i32_0 = arith.constant 0 : i32
    return %arg0, %c0_i32, %arg1 : i32, i32, i32
  }
  func.func @transform_2(%arg0: i32, %arg1: i32) -> (i32, i32) {
    %c0_i32 = arith.constant 0 : i32
    %c0_i32_0 = arith.constant 0 : i32
    %c0_i32_1 = arith.constant 0 : i32
    return %c0_i32, %c0_i32_0 : i32, i32
  }
  func.func @transform_3(%arg0: i32, %arg1: i32) -> (i32, i32) {
    %c0_i32 = arith.constant 0 : i32
    %c0_i32_0 = arith.constant 0 : i32
    %c0_i32_1 = arith.constant 0 : i32
    return %c0_i32, %c0_i32_0 : i32, i32
  }
}

</mosaic_0001>

<llo_original>
// kernel: _cross_entropy_bcq.1
$region0: #{_cross_entropy_bcq.1}
  #allocation0 [shape = 'u32[]', space=smem, size = 0x4, offset = 0x4, fixed_abs, tag = 'smem constant byte address 0x4 - core index']
  #allocation1 [shape = 'u32[144,128]{1,0:T(1,128)}', space=vmem, size = 0x12000, scoped, tag = 'internal scratch']
  #allocation2 [shape = 'f32[2,1,128]{2,1,0:T(1,128)}', space=vmem, size = 0x400, scoped, tag = 'scratch operand']
  #allocation3 [shape = 'f32[2,1,128]{2,1,0:T(1,128)}', space=vmem, size = 0x400, scoped, tag = 'scratch operand']
  %s0 = inlined_call_operand.vmem [shape: f32[2,4,128], index: 0, kind: input, shape index: {}]
  %s1 = inlined_call_operand.vmem [shape: f32[2,2,128], index: 1, kind: input, shape index: {}]
  %s2 = inlined_call_operand.hbm [shape: f32[1,1], index: 2, kind: output, shape index: {0}]
  %s3 = inlined_call_operand.hbm [shape: f32[1,1], index: 3, kind: output, shape index: {1}]
  %4 = xla_tuple %s2, %s3
  %s5 = sld [smem:[#allocation0]]
  $region34: #{_cross_entropy_bcq.1} parent=0
    _
  %s7 = ssub.s32 1, %s5
  %s8 = scalar_select 0, %s7, %s5
  $region1: #{_cross_entropy_bcq.1} parent=0
    #allocation4 [shape = 'u8[512]{0}', space=vmem, size = 0x400, scoped, tag = 'output window, operand 0, single buffered']
    #allocation5 [shape = 's32[1]{0}', space=sflag, size = 0x4, scoped, tag = 'scoped memory for _cross_entropy_bcq.1']
    #allocation6 [shape = 'u8[512]{0}', space=vmem, size = 0x400, scoped, tag = 'output window, operand 1, single buffered']
    #allocation7 [shape = 's32[1]{0}', space=sflag, size = 0x4, scoped, tag = 'scoped memory for _cross_entropy_bcq.1']
    %9 = vsyncpa [#allocation5], 0
    %10 = vsyncpa [#allocation7], 0
    // Predicated region
    $region2: #{_cross_entropy_bcq.1} parent=1 // pred_check
      _
    $region3: #{_cross_entropy_bcq.1} parent=1 // pred_check_branch
      %12 = sbr.rel (0) target = $region5
    $region4: #{_cross_entropy_bcq.1} parent=1 // pred_region
      _
    $region5: #{_cross_entropy_bcq.1} parent=1 // pred_fallthru
      _
    // Predicated region
    $region6: #{_cross_entropy_bcq.1} parent=1 // pred_check
      _
    $region7: #{_cross_entropy_bcq.1} parent=1 // pred_check_branch
      %14 = sbr.rel (0) target = $region9
    $region8: #{_cross_entropy_bcq.1} parent=1 // pred_region
      _
    $region9: #{_cross_entropy_bcq.1} parent=1 // pred_fallthru
      _
    %p15 = scmp.eq.s32.totalorder 0, 0
    %p16 = scmp.eq.s32.totalorder 0, 0
    %p17 = pnand %p15, %p16
    %p18 = pneg %p17
    // Predicated region
    $region10: #{_cross_entropy_bcq.1} parent=1 // pred_check
      _
    $region11: #{_cross_entropy_bcq.1} parent=1 // pred_check_branch
      %20 = sbr.rel (%p17) target = $region13
    $region12: #{_cross_entropy_bcq.1} parent=1 // pred_region
      %21 = vst [vmem:[#allocation2] sm:$0x1] 0.0
      %22 = vst [vmem:[#allocation2 + $0x1] sm:$0x1] 0.0
      %23 = vst [vmem:[#allocation3] sm:$0x1] 0.0
      %24 = vst [vmem:[#allocation3 + $0x1] sm:$0x1] 0.0
    $region13: #{_cross_entropy_bcq.1} parent=1 // pred_fallthru
      _
    %v25 = vld [vmem:[%s0] sm:$0xf]
    %v26 = vld [vmem:[%s0 + $0x4] sm:$0xf]
    %v27 = vld [vmem:[%s1] sm:$0x1]
    %v28 = vld [vmem:[%s1 + $0x2] sm:$0x1]
    %v29 = vld [vmem:[%s1 + $0x1] sm:$0x1]
    %v30 = vld [vmem:[%s1 + $0x3] sm:$0x1]
    %vm31 = vcmask 1043456
    %v32 = vsel %vm31, %v25, -inf
    %v33 = vrot.slane %v32, 4
    %v34 = vmax.f32 %v32, %v33
    %v35 = vrot.slane %v34, 2
    %v36 = vmax.f32 %v34, %v35
    %v37 = vrot.slane %v36, 1
    %v38 = vmax.f32 %v36, %v37
    %v39 = vsel %vm31, %v26, -inf
    %v40 = vrot.slane %v39, 4
    %v41 = vmax.f32 %v39, %v40
    %v42 = vrot.slane %v41, 2
    %v43 = vmax.f32 %v41, %v42
    %v44 = vrot.slane %v43, 1
    %v45 = vmax.f32 %v43, %v44
    %v46 = vsub.f32 %v25, %v38
    %v47 = vsub.f32 %v26, %v45
    %v48 = vmul.f32 %v46, 1.442695
    %v49 = vpow.pop %v48
    %v50 = vmul.f32 %v47, 1.442695
    %v51 = vpow.pop %v50
    %v52 = vsel %vm31, %v49, 0.0
    %v53 = vrot.slane %v52, 4
    %v54 = vadd.f32 %v52, %v53
    %v55 = vrot.slane %v54, 2
    %v56 = vadd.f32 %v54, %v55
    %v57 = vrot.slane %v56, 1
    %v58 = vadd.f32 %v56, %v57
    %v59 = vsel %vm31, %v51, 0.0
    %v60 = vrot.slane %v59, 4
    %v61 = vadd.f32 %v59, %v60
    %v62 = vrot.slane %v61, 2
    %v63 = vadd.f32 %v61, %v62
    %v64 = vrot.slane %v63, 1
    %v65 = vadd.f32 %v63, %v64
    %v66 = vlog2.pop %v58
    %v67 = vmul.f32 %v66, 0.6931472
    %v68 = vlog2.pop %v65
    %v69 = vmul.f32 %v68, 0.6931472
    %v70 = vadd.f32 %v67, %v38
    %v71 = vadd.f32 %v69, %v45
    %v72 = vld [vmem:[#allocation2] sm:$0x1]
    %v73 = vld [vmem:[#allocation2 + $0x1] sm:$0x1]
    %v74 = vsub.f32 %v70, %v29
    %v75 = vsub.f32 %v71, %v30
    %v76 = vmul.f32 %v27, %v74
    %v77 = vmul.f32 %v28, %v75
    %v78 = vadd.f32 %v72, %v76
    %v79 = vadd.f32 %v73, %v77
    %80 = vst [vmem:[#allocation2] sm:$0x1] %v78
    %81 = vst [vmem:[#allocation2 + $0x1] sm:$0x1] %v79
    %v82 = vld [vmem:[#allocation3] sm:$0x1]
    %v83 = vld [vmem:[#allocation3 + $0x1] sm:$0x1]
    %v84 = vadd.f32 %v82, %v27
    %v85 = vadd.f32 %v83, %v28
    %86 = vst [vmem:[#allocation3] sm:$0x1] %v84
    %87 = vst [vmem:[#allocation3 + $0x1] sm:$0x1] %v85
    // Predicated region
    $region14: #{_cross_entropy_bcq.1} parent=1 // pred_check
      _
    $region15: #{_cross_entropy_bcq.1} parent=1 // pred_check_branch
      %89 = sbr.rel (%p17) target = $region17
    $region16: #{_cross_entropy_bcq.1} parent=1 // pred_region
      %v90 = vld [vmem:[#allocation2] sm:$0x1]
      %v91 = vld [vmem:[#allocation2 + $0x1] sm:$0x1]
      %vm92 = vcmask 1040384
      %v93 = vsel %vm92, %v90, 0.0
      %v94 = vsel %vm92, %v91, 0.0
      %v95 = vadd.f32 %v93, %v94
      %v96 = vsel %vm92, %v95, 0.0
      %97 = vadd.xlane.f32.xlu0 %v96
      %v98 = vpop.xlane.xlu0 %97
      %vm99 = vcmask 0
      %100 = vst.msk [vmem:[#allocation4] sm:$0x1] %vm99, %v98
      %v101 = vld [vmem:[#allocation3] sm:$0x1]
      %v102 = vld [vmem:[#allocation3 + $0x1] sm:$0x1]
      %v103 = vsel %vm92, %v101, 0.0
      %v104 = vsel %vm92, %v102, 0.0
      %v105 = vadd.f32 %v103, %v104
      %v106 = vsel %vm92, %v105, 0.0
      %107 = vadd.xlane.f32.xlu0 %v106
      %v108 = vpop.xlane.xlu0 %107
      %109 = vst.msk [vmem:[#allocation6] sm:$0x1] %vm99, %v108
    $region17: #{_cross_entropy_bcq.1} parent=1 // pred_fallthru
      _
    // Predicated region
    $region18: #{_cross_entropy_bcq.1} parent=1 // pred_check
      _
    $region19: #{_cross_entropy_bcq.1} parent=1 // pred_check_branch
      %111 = sbr.rel (0) target = $region21
    $region20: #{_cross_entropy_bcq.1} parent=1 // pred_region
      %s113 = ssub.s32 16, 16
      %114 = vsyncadd [#allocation5], %s113
      %s116 = sshll.u32 [#allocation4], 4
      %s117 = int_to_ptr.vmem [resolvable:$true] %s116
      %119 = dma.vmem_to_hbm [thread:$0]  %s117, 16, %s2, [#allocation5]
    $region21: #{_cross_entropy_bcq.1} parent=1 // pred_fallthru
      _
    // Predicated region
    $region22: #{_cross_entropy_bcq.1} parent=1 // pred_check
      _
    $region23: #{_cross_entropy_bcq.1} parent=1 // pred_check_branch
      %121 = sbr.rel (0) target = $region25
    $region24: #{_cross_entropy_bcq.1} parent=1 // pred_region
      %s123 = ssub.s32 16, 16
      %124 = vsyncadd [#allocation7], %s123
      %s126 = sshll.u32 [#allocation6], 4
      %s127 = int_to_ptr.vmem [resolvable:$true] %s126
      %129 = dma.vmem_to_hbm [thread:$0]  %s127, 16, %s3, [#allocation7]
    $region25: #{_cross_entropy_bcq.1} parent=1 // pred_fallthru
      _
    // Predicated region
    $region26: #{_cross_entropy_bcq.1} parent=1 // pred_check
      _
    $region27: #{_cross_entropy_bcq.1} parent=1 // pred_check_branch
      %131 = sbr.rel (0) target = $region29
    $region28: #{_cross_entropy_bcq.1} parent=1 // pred_region
      %132 = dma.done [#allocation5], 16
    $region29: #{_cross_entropy_bcq.1} parent=1 // pred_fallthru
      _
    // Predicated region
    $region30: #{_cross_entropy_bcq.1} parent=1 // pred_check
      _
    $region31: #{_cross_entropy_bcq.1} parent=1 // pred_check_branch
      %134 = sbr.rel (0) target = $region33
    $region32: #{_cross_entropy_bcq.1} parent=1 // pred_region
      %135 = dma.done [#allocation7], 16
    $region33: #{_cross_entropy_bcq.1} parent=1 // pred_fallthru
      _
    %136 = vsyncpa [#allocation5], 1
    %137 = vsyncpa [#allocation7], 1

</llo_original>
